<compile_context>
chip_gen: v7x
topology: tpu7x:2x2x1
jax: 0.10.0
libtpu: 0.0.40
codegen_flags: <defaults>
</compile_context>

<pallas_src>
import sys
import functools

import jax
import jax.numpy as jnp
from jax.experimental import pallas as pl
from jax.experimental.pallas import tpu as pltpu

EPS = sys.float_info.epsilon  # matches `eps = sys.float_info.epsilon`
LANE = 128


def _round_up(x, m):
    return ((x + m - 1) // m) * m


def _attention_loss_kernel(*refs, num_head):
    """One grid step == one (split, M-chunk) tile across all heads.

    refs = (h0_ref, ..., h{N-1}_ref, out_ref)
      h*_ref  : (TM, 128) VMEM tile of head * for this chunk.
      out_ref : (1, TM, 128) per-split elementwise running partial of
                sum_{i<j}(xi - xj)^2 = N * sum_i xi^2 - (sum_i xi)^2
                (resident across the inner "arbitrary" chunk axis).
    """
    head_refs = refs[:num_head]
    out_ref = refs[num_head]

    @pl.when(pl.program_id(1) == 0)
    def _():
        out_ref[...] = jnp.zeros_like(out_ref)

    x0 = head_refs[0][...].astype(jnp.float32)
    s = x0                 # running elementwise sum over heads
    sq = x0 * x0           # running elementwise sum of squares over heads
    for h_ref in head_refs[1:]:
        x = h_ref[...].astype(jnp.float32)
        s = s + x
        sq = sq + x * x

    # Pure VPU; all reductions deferred to the wrapper.
    part = jnp.float32(num_head) * sq - s * s      # (TM, 128)
    out_ref[...] = out_ref[...] + part[None, :, :]


def attention_loss(heads):
    """heads: list of arrays, all same shape (e.g. NCHW). Returns scalar f32."""
    num_head = len(heads)
    if num_head <= 1:
        return jnp.float32(0.0)

    numel = 1
    for d in heads[0].shape:
        numel *= int(d)
    cnt = num_head * (num_head - 1) // 2

    # ---- tile-size selection -------------------------------------------------
    M = pl.cdiv(numel, LANE)  # rows of the (M, 128) slab per head
    # Keep (num_head inputs x 2 pipeline buffers + output block) under ~8 MiB,
    # comfortably inside the default scoped VMEM on v5e (16 MiB) and v6e/v7x.
    vmem_budget = 8 * 1024 * 1024
    rows = vmem_budget // ((num_head * 2 + 2) * LANE * 4)
    TM = max(8, min(1024, (rows // 8) * 8))
    TM = min(TM, _round_up(M, 8))

    n_chunks_total = pl.cdiv(M, TM)
    # Split the chunk axis across TensorCores when there is enough work
    # (engages the 2nd TC on v7x; harmless on v5e/v6e).
    NSPLIT = 2 if n_chunks_total >= 2 else 1
    chunks_per_split = pl.cdiv(n_chunks_total, NSPLIT)
    Mp = NSPLIT * chunks_per_split * TM

    # ---- lay each head out as a lane-dense (Mp, 128) slab (zero-pad tail) ----
    # Zero padding contributes 0 to both N*sum(x^2) and (sum x)^2, so it does
    # not perturb the loss; the mean uses the true (unpadded) `numel`.
    def _slab(h):
        flat = h.reshape(-1)
        pad = Mp * LANE - numel
        if pad:
            flat = jnp.pad(flat, (0, pad))
        return flat.reshape(Mp, LANE)

    slabs = [_slab(h) for h in heads]

    kernel = functools.partial(_attention_loss_kernel, num_head=num_head)

    head_spec = pl.BlockSpec(
        (TM, LANE), lambda s, m: (s * chunks_per_split + m, 0))
    out_spec = pl.BlockSpec((1, TM, LANE), lambda s, m: (s, 0, 0))

    partials = pl.pallas_call(
        kernel,
        out_shape=jax.ShapeDtypeStruct((NSPLIT, TM, LANE), jnp.float32),
        grid_spec=pltpu.PrefetchScalarGridSpec(
            num_scalar_prefetch=0,
            grid=(NSPLIT, chunks_per_split),
            in_specs=[head_spec] * num_head,
            out_specs=out_spec,
        ),
        compiler_params=pltpu.CompilerParams(
            dimension_semantics=("parallel", "arbitrary"),
        ),
    )(*slabs)

    # Tiny finalize (off the hot path): one reduce + scalar math.
    pair_sq_sum = jnp.sum(partials)                 # sum_{i<j} ||xi - xj||^2
    loss = pair_sq_sum / jnp.float32(numel)         # sum of pairwise MSEs
    return jnp.float32(cnt) / (loss + jnp.float32(EPS))


def _reference(heads):
    """Pure-JAX pairwise reference matching the PyTorch forward exactly."""
    num_head = len(heads)
    if num_head <= 1:
        return jnp.float32(0.0)
    loss = jnp.float32(0.0)
    cnt = 0
    for i in range(num_head - 1):
        for j in range(i + 1, num_head):
            loss = loss + jnp.mean((heads[i] - heads[j]) ** 2)
            cnt += 1
    return cnt / (loss + EPS)


if __name__ == "__main__":
    key = jax.random.PRNGKey(0)
    num_head, B, C, H, W = 4, 2, 4, 16, 16  # 4 attention heads, each NCHW
    keys = jax.random.split(key, num_head)
    heads = [
        jax.random.normal(k, (B, C, H, W), dtype=jnp.float32) for k in keys
    ]

    out = attention_loss(heads)
    out = jax.block_until_ready(out)

    ref = jax.block_until_ready(_reference(heads))
    assert jnp.allclose(out, ref, rtol=1e-4, atol=1e-5), (out, ref)

    print("KERNEL_OK")
</pallas_src>

<mosaic_0001>
module attributes {stable_mosaic.version = 11 : i64} {
  func.func @_attention_loss_kernel(%arg0: i32, %arg1: i32, %arg2: memref<16x128xf32, #tpu.memory_space<vmem>>, %arg3: memref<16x128xf32, #tpu.memory_space<vmem>>, %arg4: memref<16x128xf32, #tpu.memory_space<vmem>>, %arg5: memref<16x128xf32, #tpu.memory_space<vmem>>, %arg6: memref<1x16x128xf32, #tpu.memory_space<vmem>>) attributes {dimension_semantics = [#tpu.dimension_semantics<parallel>, #tpu.dimension_semantics<arbitrary>], iteration_bounds = array<i64: 1, 1>, scalar_prefetch = 0 : i64, scratch_operands = 0 : i64, tpu.core_type = #tpu.core_type<tc>, window_params = [{transform_indices = @transform_0, window_bounds = array<i64: 16, 128>}, {transform_indices = @transform_1, window_bounds = array<i64: 16, 128>}, {transform_indices = @transform_2, window_bounds = array<i64: 16, 128>}, {transform_indices = @transform_3, window_bounds = array<i64: 16, 128>}, {transform_indices = @transform_4, window_bounds = array<i64: 1, 16, 128>}]} {
    %c0_i32 = arith.constant 0 : i32
    %0 = arith.cmpi eq, %arg1, %c0_i32 : i32
    %1 = arith.extui %0 : i1 to i32
    %c0_i32_0 = arith.constant 0 : i32
    %2 = arith.cmpi ne, %1, %c0_i32_0 : i32
    scf.if %2 {
      %cst_14 = arith.constant 0.000000e+00 : f32
      %25 = vector.broadcast %cst_14 : f32 to vector<1x16x128xf32>
      %c0_15 = arith.constant 0 : index
      %c0_16 = arith.constant 0 : index
      %c0_17 = arith.constant 0 : index
      %26 = vector.load %arg6[%c0_15, %c0_16, %c0_17] : memref<1x16x128xf32, #tpu.memory_space<vmem>>, vector<1x16x128xf32>
      tpu.vector_store %arg6[%c0_15, %c0_16, %c0_17], %25 {strides = array<i32>} : memref<1x16x128xf32, #tpu.memory_space<vmem>>, vector<1x16x128xf32>,
    } else {
    }
    %c0 = arith.constant 0 : index
    %c0_1 = arith.constant 0 : index
    %3 = vector.load %arg2[%c0, %c0_1] : memref<16x128xf32, #tpu.memory_space<vmem>>, vector<16x128xf32>
    %4 = arith.mulf %3, %3 : vector<16x128xf32>
    %c0_2 = arith.constant 0 : index
    %c0_3 = arith.constant 0 : index
    %5 = vector.load %arg3[%c0_2, %c0_3] : memref<16x128xf32, #tpu.memory_space<vmem>>, vector<16x128xf32>
    %6 = arith.addf %3, %5 : vector<16x128xf32>
    %7 = arith.mulf %5, %5 : vector<16x128xf32>
    %8 = arith.addf %4, %7 : vector<16x128xf32>
    %c0_4 = arith.constant 0 : index
    %c0_5 = arith.constant 0 : index
    %9 = vector.load %arg4[%c0_4, %c0_5] : memref<16x128xf32, #tpu.memory_space<vmem>>, vector<16x128xf32>
    %10 = arith.addf %6, %9 : vector<16x128xf32>
    %11 = arith.mulf %9, %9 : vector<16x128xf32>
    %12 = arith.addf %8, %11 : vector<16x128xf32>
    %c0_6 = arith.constant 0 : index
    %c0_7 = arith.constant 0 : index
    %13 = vector.load %arg5[%c0_6, %c0_7] : memref<16x128xf32, #tpu.memory_space<vmem>>, vector<16x128xf32>
    %14 = arith.addf %10, %13 : vector<16x128xf32>
    %15 = arith.mulf %13, %13 : vector<16x128xf32>
    %16 = arith.addf %12, %15 : vector<16x128xf32>
    %cst = arith.constant 4.000000e+00 : f32
    %17 = vector.broadcast %cst : f32 to vector<16x128xf32>
    %18 = arith.mulf %17, %16 : vector<16x128xf32>
    %19 = arith.mulf %14, %14 : vector<16x128xf32>
    %20 = arith.subf %18, %19 : vector<16x128xf32>
    %c0_8 = arith.constant 0 : index
    %c0_9 = arith.constant 0 : index
    %c0_10 = arith.constant 0 : index
    %21 = vector.load %arg6[%c0_8, %c0_9, %c0_10] : memref<1x16x128xf32, #tpu.memory_space<vmem>>, vector<1x16x128xf32>
    %22 = vector.shape_cast %20 : vector<16x128xf32> to vector<1x16x128xf32>
    %23 = arith.addf %21, %22 : vector<1x16x128xf32>
    %c0_11 = arith.constant 0 : index
    %c0_12 = arith.constant 0 : index
    %c0_13 = arith.constant 0 : index
    %24 = vector.load %arg6[%c0_11, %c0_12, %c0_13] : memref<1x16x128xf32, #tpu.memory_space<vmem>>, vector<1x16x128xf32>
    tpu.vector_store %arg6[%c0_11, %c0_12, %c0_13], %23 {strides = array<i32>} : memref<1x16x128xf32, #tpu.memory_space<vmem>>, vector<1x16x128xf32>,
    return
  }
  func.func @transform_0(%arg0: i32, %arg1: i32) -> (i32, i32) {
    %c1_i32 = arith.constant 1 : i32
    %0 = arith.muli %arg0, %c1_i32 : i32
    %1 = arith.addi %0, %arg1 : i32
    %c0_i32 = arith.constant 0 : i32
    %c0_i32_0 = arith.constant 0 : i32
    return %1, %c0_i32 : i32, i32
  }
  func.func @transform_1(%arg0: i32, %arg1: i32) -> (i32, i32) {
    %c1_i32 = arith.constant 1 : i32
    %0 = arith.muli %arg0, %c1_i32 : i32
    %1 = arith.addi %0, %arg1 : i32
    %c0_i32 = arith.constant 0 : i32
    %c0_i32_0 = arith.constant 0 : i32
    return %1, %c0_i32 : i32, i32
  }
  func.func @transform_2(%arg0: i32, %arg1: i32) -> (i32, i32) {
    %c1_i32 = arith.constant 1 : i32
    %0 = arith.muli %arg0, %c1_i32 : i32
    %1 = arith.addi %0, %arg1 : i32
    %c0_i32 = arith.constant 0 : i32
    %c0_i32_0 = arith.constant 0 : i32
    return %1, %c0_i32 : i32, i32
  }
  func.func @transform_3(%arg0: i32, %arg1: i32) -> (i32, i32) {
    %c1_i32 = arith.constant 1 : i32
    %0 = arith.muli %arg0, %c1_i32 : i32
    %1 = arith.addi %0, %arg1 : i32
    %c0_i32 = arith.constant 0 : i32
    %c0_i32_0 = arith.constant 0 : i32
    return %1, %c0_i32 : i32, i32
  }
  func.func @transform_4(%arg0: i32, %arg1: i32) -> (i32, i32, i32) {
    %c0_i32 = arith.constant 0 : i32
    %c0_i32_0 = arith.constant 0 : i32
    %c0_i32_1 = arith.constant 0 : i32
    return %arg0, %c0_i32, %c0_i32_0 : i32, i32, i32
  }
}

</mosaic_0001>

<llo_original>
// kernel: tpu_custom_call.1
$region0: #{tpu_custom_call.1}
  #allocation0 [shape = 'u32[]', space=smem, size = 0x4, offset = 0x4, fixed_abs, tag = 'smem constant byte address 0x4 - core index']
  #allocation1 [shape = 'u32[144,128]{1,0:T(1,128)}', space=vmem, size = 0x12000, scoped, tag = 'internal scratch']
  %s0 = inlined_call_operand.hbm [shape: f32[16,128], index: 0, kind: input, shape index: {}]
  %s1 = inlined_call_operand.hbm [shape: f32[16,128], index: 1, kind: input, shape index: {}]
  %s2 = inlined_call_operand.hbm [shape: f32[16,128], index: 2, kind: input, shape index: {}]
  %s3 = inlined_call_operand.hbm [shape: f32[16,128], index: 3, kind: input, shape index: {}]
  %s4 = inlined_call_operand.hbm [shape: f32[1,16,128], index: 4, kind: output, shape index: {}]
  %s5 = sld [smem:[#allocation0]]
  $region46: #{tpu_custom_call.1} parent=0
    _
  %s7 = ssub.s32 1, %s5
  %s8 = scalar_select 0, %s7, %s5
  $region1: #{tpu_custom_call.1} parent=0
    #allocation2 [shape = 'u8[8192]{0}', space=vmem, size = 0x2000, scoped, tag = 'input window, operand 0, single buffered']
    #allocation3 [shape = 's32[1]{0}', space=sflag, size = 0x4, scoped, tag = 'scoped memory for tpu_custom_call.1']
    #allocation4 [shape = 's32[1]{0}', space=sflag, size = 0x4, scoped, tag = 'scoped memory for tpu_custom_call.1']
    #allocation5 [shape = 'u8[8192]{0}', space=vmem, size = 0x2000, scoped, tag = 'input window, operand 1, single buffered']
    #allocation6 [shape = 's32[1]{0}', space=sflag, size = 0x4, scoped, tag = 'scoped memory for tpu_custom_call.1']
    #allocation7 [shape = 'u8[8192]{0}', space=vmem, size = 0x2000, scoped, tag = 'input window, operand 2, single buffered']
    #allocation8 [shape = 'u8[8192]{0}', space=vmem, size = 0x2000, scoped, tag = 'input window, operand 3, single buffered']
    #allocation9 [shape = 's32[1]{0}', space=sflag, size = 0x4, scoped, tag = 'scoped memory for tpu_custom_call.1']
    #allocation10 [shape = 'u8[8192]{0}', space=vmem, size = 0x2000, scoped, tag = 'output window, operand 0, single buffered']
    %9 = vsyncpa [#allocation3], 0
    %10 = vsyncpa [#allocation6], 0
    %11 = vsyncpa [#allocation9], 0
    %12 = vsyncpa [#allocation4], 0
    // Predicated region
    $region2: #{tpu_custom_call.1} parent=1 // pred_check
      _
    $region3: #{tpu_custom_call.1} parent=1 // pred_check_branch
      %14 = sbr.rel (0) target = $region5
    $region4: #{tpu_custom_call.1} parent=1 // pred_region
      %s15 = sadd.s32 0, 0
      %s16 = smul.u32 2, %s15
      %s18 = ssub.s32 256, 256
      %19 = vsyncadd [#allocation3], %s18
      %s20 = smul.addr %s16, 128
      %s21 = scalar_lea.hbm %s0, %s20
      %s22 = sshll.u32 [#allocation2], 4
      %s23 = int_to_ptr.vmem [resolvable:$true] %s22
      %28 = dma.hbm_to_vmem [thread:$0]  %s21, 256, %s23, [#allocation3], 128, 128, 8
    $region5: #{tpu_custom_call.1} parent=1 // pred_fallthru
      _
    // Predicated region
    $region6: #{tpu_custom_call.1} parent=1 // pred_check
      _
    $region7: #{tpu_custom_call.1} parent=1 // pred_check_branch
      %30 = sbr.rel (0) target = $region9
    $region8: #{tpu_custom_call.1} parent=1 // pred_region
      %s31 = sadd.s32 0, 0
      %s32 = smul.u32 2, %s31
      %s34 = ssub.s32 256, 256
      %35 = vsyncadd [#allocation6], %s34
      %s36 = smul.addr %s32, 128
      %s37 = scalar_lea.hbm %s1, %s36
      %s38 = sshll.u32 [#allocation5], 4
      %s39 = int_to_ptr.vmem [resolvable:$true] %s38
      %44 = dma.hbm_to_vmem [thread:$0]  %s37, 256, %s39, [#allocation6], 128, 128, 8
    $region9: #{tpu_custom_call.1} parent=1 // pred_fallthru
      _
    // Predicated region
    $region10: #{tpu_custom_call.1} parent=1 // pred_check
      _
    $region11: #{tpu_custom_call.1} parent=1 // pred_check_branch
      %46 = sbr.rel (0) target = $region13
    $region12: #{tpu_custom_call.1} parent=1 // pred_region
      %s47 = sadd.s32 0, 0
      %s48 = smul.u32 2, %s47
      %s50 = ssub.s32 256, 256
      %51 = vsyncadd [#allocation6], %s50
      %s52 = smul.addr %s48, 128
      %s53 = scalar_lea.hbm %s2, %s52
      %s54 = sshll.u32 [#allocation7], 4
      %s55 = int_to_ptr.vmem [resolvable:$true] %s54
      %60 = dma.hbm_to_vmem [thread:$0]  %s53, 256, %s55, [#allocation6], 128, 128, 8
    $region13: #{tpu_custom_call.1} parent=1 // pred_fallthru
      _
    // Predicated region
    $region14: #{tpu_custom_call.1} parent=1 // pred_check
      _
    $region15: #{tpu_custom_call.1} parent=1 // pred_check_branch
      %62 = sbr.rel (0) target = $region17
    $region16: #{tpu_custom_call.1} parent=1 // pred_region
      %s63 = sadd.s32 0, 0
      %s64 = smul.u32 2, %s63
      %s66 = ssub.s32 256, 256
      %67 = vsyncadd [#allocation9], %s66
      %s68 = smul.addr %s64, 128
      %s69 = scalar_lea.hbm %s3, %s68
      %s70 = sshll.u32 [#allocation8], 4
      %s71 = int_to_ptr.vmem [resolvable:$true] %s70
      %76 = dma.hbm_to_vmem [thread:$0]  %s69, 256, %s71, [#allocation9], 128, 128, 8
    $region17: #{tpu_custom_call.1} parent=1 // pred_fallthru
      _
    // Predicated region
    $region18: #{tpu_custom_call.1} parent=1 // pred_check
      _
    $region19: #{tpu_custom_call.1} parent=1 // pred_check_branch
      %78 = sbr.rel (0) target = $region21
    $region20: #{tpu_custom_call.1} parent=1 // pred_region
      %79 = dma.done [#allocation3], 256
    $region21: #{tpu_custom_call.1} parent=1 // pred_fallthru
      _
    // Predicated region
    $region22: #{tpu_custom_call.1} parent=1 // pred_check
      _
    $region23: #{tpu_custom_call.1} parent=1 // pred_check_branch
      %81 = sbr.rel (0) target = $region25
    $region24: #{tpu_custom_call.1} parent=1 // pred_region
      %82 = dma.done [#allocation6], 256
    $region25: #{tpu_custom_call.1} parent=1 // pred_fallthru
      _
    // Predicated region
    $region26: #{tpu_custom_call.1} parent=1 // pred_check
      _
    $region27: #{tpu_custom_call.1} parent=1 // pred_check_branch
      %84 = sbr.rel (0) target = $region29
    $region28: #{tpu_custom_call.1} parent=1 // pred_region
      %85 = dma.done [#allocation6], 256
    $region29: #{tpu_custom_call.1} parent=1 // pred_fallthru
      _
    // Predicated region
    $region30: #{tpu_custom_call.1} parent=1 // pred_check
      _
    $region31: #{tpu_custom_call.1} parent=1 // pred_check_branch
      %87 = sbr.rel (0) target = $region33
    $region32: #{tpu_custom_call.1} parent=1 // pred_region
      %88 = dma.done [#allocation9], 256
    $region33: #{tpu_custom_call.1} parent=1 // pred_fallthru
      _
    %s89 = sadd.s32 0, 0
    %s90 = smul.u32 2, %s89
    %s91 = sadd.s32 0, 0
    %s92 = smul.u32 2, %s91
    %s93 = sadd.s32 0, 0
    %s94 = smul.u32 2, %s93
    %s95 = sadd.s32 0, 0
    %s96 = smul.u32 2, %s95
    %p97 = scmp.eq.s32.totalorder 0, 0
    // Predicated region
    $region34: #{tpu_custom_call.1} parent=1 // pred_check
      %p98 = pneg %p97
    $region35: #{tpu_custom_call.1} parent=1 // pred_check_branch
      %100 = sbr.rel (%p98) target = $region37
    $region36: #{tpu_custom_call.1} parent=1 // pred_region
      %101 = vst [vmem:[#allocation10] sm:$0xff] 0.0
      %102 = vst [vmem:[#allocation10 + $0x8] sm:$0xff] 0.0
    $region37: #{tpu_custom_call.1} parent=1 // pred_fallthru
      _
    %v103 = vld [vmem:[#allocation2] sm:$0xff]
    %v104 = vld [vmem:[#allocation2 + $0x8] sm:$0xff]
    %v105 = vmul.f32 %v103, %v103
    %v106 = vmul.f32 %v104, %v104
    %v107 = vld [vmem:[#allocation5] sm:$0xff]
    %v108 = vld [vmem:[#allocation5 + $0x8] sm:$0xff]
    %v109 = vadd.f32 %v103, %v107
    %v110 = vadd.f32 %v104, %v108
    %v111 = vmul.f32 %v107, %v107
    %v112 = vmul.f32 %v108, %v108
    %v113 = vadd.f32 %v105, %v111
    %v114 = vadd.f32 %v106, %v112
    %v115 = vld [vmem:[#allocation7] sm:$0xff]
    %v116 = vld [vmem:[#allocation7 + $0x8] sm:$0xff]
    %v117 = vadd.f32 %v109, %v115
    %v118 = vadd.f32 %v110, %v116
    %v119 = vmul.f32 %v115, %v115
    %v120 = vmul.f32 %v116, %v116
    %v121 = vadd.f32 %v113, %v119
    %v122 = vadd.f32 %v114, %v120
    %v123 = vld [vmem:[#allocation8] sm:$0xff]
    %v124 = vld [vmem:[#allocation8 + $0x8] sm:$0xff]
    %v125 = vadd.f32 %v117, %v123
    %v126 = vadd.f32 %v118, %v124
    %v127 = vmul.f32 %v123, %v123
    %v128 = vmul.f32 %v124, %v124
    %v129 = vadd.f32 %v121, %v127
    %v130 = vadd.f32 %v122, %v128
    %v131 = vmul.f32 %v129, 4.0
    %v132 = vmul.f32 %v130, 4.0
    %v133 = vmul.f32 %v125, %v125
    %v134 = vmul.f32 %v126, %v126
    %v135 = vsub.f32 %v131, %v133
    %v136 = vsub.f32 %v132, %v134
    %v137 = vld [vmem:[#allocation10] sm:$0xff]
    %v138 = vld [vmem:[#allocation10 + $0x8] sm:$0xff]
    %v139 = vadd.f32 %v137, %v135
    %v140 = vadd.f32 %v138, %v136
    %141 = vst [vmem:[#allocation10] sm:$0xff] %v139
    %142 = vst [vmem:[#allocation10 + $0x8] sm:$0xff] %v140
    // Predicated region
    $region38: #{tpu_custom_call.1} parent=1 // pred_check
      _
    $region39: #{tpu_custom_call.1} parent=1 // pred_check_branch
      %144 = sbr.rel (0) target = $region41
    $region40: #{tpu_custom_call.1} parent=1 // pred_region
      %s146 = ssub.s32 256, 256
      %147 = vsyncadd [#allocation4], %s146
      %s148 = sshll.u32 [#allocation10], 4
      %s149 = int_to_ptr.vmem [resolvable:$true] %s148
      %154 = dma.vmem_to_hbm [thread:$0]  %s149, 256, %s4, [#allocation4], 128, 128, 8
    $region41: #{tpu_custom_call.1} parent=1 // pred_fallthru
      _
    // Predicated region
    $region42: #{tpu_custom_call.1} parent=1 // pred_check
      _
    $region43: #{tpu_custom_call.1} parent=1 // pred_check_branch
      %156 = sbr.rel (0) target = $region45
    $region44: #{tpu_custom_call.1} parent=1 // pred_region
      %157 = dma.done [#allocation4], 256
    $region45: #{tpu_custom_call.1} parent=1 // pred_fallthru
      _
    %158 = vsyncpa [#allocation3], 1
    %159 = vsyncpa [#allocation6], 1
    %160 = vsyncpa [#allocation9], 1
    %161 = vsyncpa [#allocation4], 1

</llo_original>
